<compile_context>
chip_gen: v7x
topology: tpu7x:2x2x1
jax: 0.10.0
libtpu: 0.0.40
codegen_flags: <defaults>
</compile_context>

<pallas_src>
import math
import jax
import jax.numpy as jnp
from jax.experimental import pallas as pl
from jax.experimental.pallas import tpu as pltpu


def _round_up(n, m):
    return ((n + m - 1) // m) * m


def mlp_kernel(x_ref, w1_ref, b1_ref, w2_ref, b2_ref, w3_ref, o_ref):
    # Batch is on the lane (fast, 128-wide) axis in this transposed layout.
    x = x_ref[...]                                        # [1, TB]

    # Layer 1: in_features == 1 -> K=1 "matmul" is a pure VPU broadcast mul-add.
    h1 = jnp.tanh(w1_ref[...] * x + b1_ref[...])          # [H1, TB]

    # Layer 2: the only substantial matmul (H2 x H1 @ H1 x TB) -> MXU, f32 acc.
    h2 = jnp.tanh(
        jnp.dot(w2_ref[...], h1, preferred_element_type=jnp.float32)
        + b2_ref[...]
    )                                                     # [H2, TB]

    # Layer 3 (no bias): tiny M (= out_dim) but lane-dense on the batch axis,
    # so the store is an unmasked vst and there is no output padding at all.
    o_ref[...] = jnp.dot(
        w3_ref[...], h2, preferred_element_type=jnp.float32
    ).astype(o_ref.dtype)                                 # [out_dim, TB]


def fc_net_laplace_forward(x, w1, b1, w2, b2, w3, *, tb=2048):
    """Forward pass of FC_Net_Laplace.

    x : [B, 1] f32
    w1: [H1, 1],  b1: [H1, 1]          (PyTorch [out, in] layout)
    w2: [H2, H1], b2: [H2, 1]
    w3: [out_dim, H2]                   (no bias)
    Returns [B, out_dim] f32.
    """
    B = x.shape[0]
    H1 = w1.shape[0]
    H2 = w2.shape[0]
    out_dim = w3.shape[0]

    # Transposed layout: batch on lanes.  [B, 1] -> [1, B] is a cheap reshape.
    x_t = x.reshape(1, B)

    # Batch tiling: `tb` lanes per grid step (multiple of 128 so every block is
    # lane-dense).  Cap tb so the grid has >= 2 steps whenever the (padded)
    # batch allows it, then rebalance tb to minimize batch padding.
    Bp0 = _round_up(B, 128)
    tb_cap = max(128, (Bp0 // 2 // 128) * 128)        # >=2 steps when Bp0 >= 256
    tb = max(128, min(_round_up(tb, 128), tb_cap))
    n_steps = pl.cdiv(Bp0, tb)
    tb = _round_up(pl.cdiv(Bp0, n_steps), 128)
    Bp = tb * n_steps
    if Bp != B:
        x_t = jnp.pad(x_t, ((0, 0), (0, Bp - B)))
    grid = (n_steps,)

    # Weights/biases: full-array blocks with constant index_maps -> DMA'd once,
    # VMEM-resident across all grid steps.
    const = lambda shape: pl.BlockSpec(shape, lambda i: (0,) * len(shape))

    cost = pl.CostEstimate(
        flops=2 * Bp * (H1 + H1 * H2 + H2 * out_dim),
        transcendentals=Bp * (H1 + H2),
        bytes_accessed=4 * (
            x_t.size + w1.size + b1.size + w2.size + b2.size + w3.size
            + Bp * out_dim
        ),
    )

    out_t = pl.pallas_call(
        mlp_kernel,
        out_shape=jax.ShapeDtypeStruct((out_dim, Bp), jnp.float32),
        grid=grid,
        in_specs=[
            pl.BlockSpec((1, tb), lambda i: (0, i)),   # x: batch-tiled on lanes
            const(w1.shape),
            const(b1.shape),
            const(w2.shape),
            const(b2.shape),
            const(w3.shape),
        ],
        out_specs=pl.BlockSpec((out_dim, tb), lambda i: (0, i)),
        compiler_params=pltpu.CompilerParams(
            # Batch tiles are independent -> shard across TCs on v7x;
            # harmless on single-TC v5e/v6e.
            dimension_semantics=("parallel",),
        ),
        cost_estimate=cost,
    )(x_t, w1, b1, w2, b2, w3)

    # Back to the module's [B, out_dim] convention (tiny: out_dim*B*4 bytes).
    return out_t[:, :B].T


def init_params(key, out_dim):
    """Deterministic init mimicking nn.Linear default (uniform +-1/sqrt(fan_in)).

    Weights stored in PyTorch layout [out, in]; biases as [out, 1] columns."""
    k1, k2, k3, k4, k5 = jax.random.split(key, 5)

    def lin(kw, kb, fan_in, fan_out, bias=True):
        bound = 1.0 / math.sqrt(fan_in)
        w = jax.random.uniform(kw, (fan_out, fan_in), jnp.float32, -bound, bound)
        b = (jax.random.uniform(kb, (fan_out, 1), jnp.float32, -bound, bound)
             if bias else None)
        return w, b

    w1, b1 = lin(k1, k2, 1, 200)
    w2, b2 = lin(k3, k4, 200, 100)
    w3, _ = lin(k5, None, 100, out_dim, bias=False)
    return w1, b1, w2, b2, w3


def _reference(x, w1, b1, w2, b2, w3):
    h1 = jnp.tanh(x @ w1.T + b1.reshape(1, -1))
    h2 = jnp.tanh(h1 @ w2.T + b2.reshape(1, -1))
    return h2 @ w3.T


# TODO(synk): delete_last_layer / new_forward (truncated network) and the Adam
# optimizer/weight-decay training step are not part of the forward kernel.

if __name__ == "__main__":
    key = jax.random.PRNGKey(0)
    k_param, k_x1, k_x2 = jax.random.split(key, 3)

    out_dim = 2
    w1, b1, w2, b2, w3 = init_params(k_param, out_dim)

    # Small batch (not a multiple of 128) -> exercises batch padding, grid = 1.
    batch = 20
    x = jax.random.normal(k_x1, (batch, 1), dtype=jnp.float32)
    out = jax.block_until_ready(fc_net_laplace_forward(x, w1, b1, w2, b2, w3))
    ref = _reference(x, w1, b1, w2, b2, w3)
    assert out.shape == (batch, out_dim)
    assert jnp.allclose(out, ref, atol=1e-5, rtol=1e-5)

    # Larger batch -> exercises the multi-step grid ("parallel" batch axis).
    batch2 = 300
    x2 = jax.random.normal(k_x2, (batch2, 1), dtype=jnp.float32)
    out2 = jax.block_until_ready(fc_net_laplace_forward(x2, w1, b1, w2, b2, w3))
    ref2 = _reference(x2, w1, b1, w2, b2, w3)
    assert out2.shape == (batch2, out_dim)
    assert jnp.allclose(out2, ref2, atol=1e-5, rtol=1e-5)

    print("KERNEL_OK")
</pallas_src>

<mosaic_0001>
module attributes {stable_mosaic.version = 11 : i64} {
  func.func @mlp_kernel(%arg0: i32, %arg1: memref<1x128xf32, #tpu.memory_space<vmem>>, %arg2: memref<200x1xf32, #tpu.memory_space<vmem>>, %arg3: memref<200x1xf32, #tpu.memory_space<vmem>>, %arg4: memref<100x200xf32, #tpu.memory_space<vmem>>, %arg5: memref<100x1xf32, #tpu.memory_space<vmem>>, %arg6: memref<2x100xf32, #tpu.memory_space<vmem>>, %arg7: memref<2x128xf32, #tpu.memory_space<vmem>>) attributes {dimension_semantics = [#tpu.dimension_semantics<parallel>], iteration_bounds = array<i64: 1>, scalar_prefetch = 0 : i64, scratch_operands = 0 : i64, tpu.core_type = #tpu.core_type<tc>, window_params = [{transform_indices = @transform_0, window_bounds = array<i64: 1, 128>}, {pipeline_mode = #tpu.pipeline_mode<synchronous>, transform_indices = @transform_1, window_bounds = array<i64: 200, 1>}, {pipeline_mode = #tpu.pipeline_mode<synchronous>, transform_indices = @transform_2, window_bounds = array<i64: 200, 1>}, {pipeline_mode = #tpu.pipeline_mode<synchronous>, transform_indices = @transform_3, window_bounds = array<i64: 100, 200>}, {pipeline_mode = #tpu.pipeline_mode<synchronous>, transform_indices = @transform_4, window_bounds = array<i64: 100, 1>}, {pipeline_mode = #tpu.pipeline_mode<synchronous>, transform_indices = @transform_5, window_bounds = array<i64: 2, 100>}, {transform_indices = @transform_6, window_bounds = array<i64: 2, 128>}]} {
    %c0 = arith.constant 0 : index
    %c0_0 = arith.constant 0 : index
    %0 = vector.load %arg1[%c0, %c0_0] : memref<1x128xf32, #tpu.memory_space<vmem>>, vector<1x128xf32>
    %c0_1 = arith.constant 0 : index
    %c0_2 = arith.constant 0 : index
    %1 = vector.load %arg2[%c0_1, %c0_2] : memref<200x1xf32, #tpu.memory_space<vmem>>, vector<200x1xf32>
    %2 = vector.broadcast %1 : vector<200x1xf32> to vector<200x128xf32>
    %3 = vector.broadcast %0 : vector<1x128xf32> to vector<200x128xf32>
    %4 = arith.mulf %2, %3 : vector<200x128xf32>
    %c0_3 = arith.constant 0 : index
    %c0_4 = arith.constant 0 : index
    %5 = vector.load %arg3[%c0_3, %c0_4] : memref<200x1xf32, #tpu.memory_space<vmem>>, vector<200x1xf32>
    %6 = vector.broadcast %5 : vector<200x1xf32> to vector<200x128xf32>
    %7 = arith.addf %4, %6 : vector<200x128xf32>
    %8 = math.tanh %7 : vector<200x128xf32>
    %c0_5 = arith.constant 0 : index
    %c0_6 = arith.constant 0 : index
    %9 = vector.load %arg4[%c0_5, %c0_6] : memref<100x200xf32, #tpu.memory_space<vmem>>, vector<100x200xf32>
    %cst = arith.constant dense<0.000000e+00> : vector<100x128xf32>
    %10 = tpu.matmul %9, %8, %cst {dimension_numbers = #tpu.dot_dimension_numbers<[1], [0], [0], [1], [0, 0, 1, 1], [], []>} : vector<100x200xf32>, vector<200x128xf32>, vector<100x128xf32> -> vector<100x128xf32>
    %c0_7 = arith.constant 0 : index
    %c0_8 = arith.constant 0 : index
    %11 = vector.load %arg5[%c0_7, %c0_8] : memref<100x1xf32, #tpu.memory_space<vmem>>, vector<100x1xf32>
    %12 = vector.broadcast %11 : vector<100x1xf32> to vector<100x128xf32>
    %13 = arith.addf %10, %12 : vector<100x128xf32>
    %14 = math.tanh %13 : vector<100x128xf32>
    %c0_9 = arith.constant 0 : index
    %c0_10 = arith.constant 0 : index
    %15 = vector.load %arg6[%c0_9, %c0_10] : memref<2x100xf32, #tpu.memory_space<vmem>>, vector<2x100xf32>
    %cst_11 = arith.constant dense<0.000000e+00> : vector<2x128xf32>
    %16 = tpu.matmul %15, %14, %cst_11 {dimension_numbers = #tpu.dot_dimension_numbers<[1], [0], [0], [1], [0, 0, 1, 1], [], []>} : vector<2x100xf32>, vector<100x128xf32>, vector<2x128xf32> -> vector<2x128xf32>
    %c0_12 = arith.constant 0 : index
    %c0_13 = arith.constant 0 : index
    %17 = vector.load %arg7[%c0_12, %c0_13] : memref<2x128xf32, #tpu.memory_space<vmem>>, vector<2x128xf32>
    tpu.vector_store %arg7[%c0_12, %c0_13], %16 {strides = array<i32>} : memref<2x128xf32, #tpu.memory_space<vmem>>, vector<2x128xf32>,
    return
  }
  func.func @transform_0(%arg0: i32) -> (i32, i32) {
    %c0_i32 = arith.constant 0 : i32
    %c0_i32_0 = arith.constant 0 : i32
    return %c0_i32, %arg0 : i32, i32
  }
  func.func @transform_1(%arg0: i32) -> (i32, i32) {
    %c0_i32 = arith.constant 0 : i32
    %c0_i32_0 = arith.constant 0 : i32
    %c0_i32_1 = arith.constant 0 : i32
    return %c0_i32, %c0_i32_0 : i32, i32
  }
  func.func @transform_2(%arg0: i32) -> (i32, i32) {
    %c0_i32 = arith.constant 0 : i32
    %c0_i32_0 = arith.constant 0 : i32
    %c0_i32_1 = arith.constant 0 : i32
    return %c0_i32, %c0_i32_0 : i32, i32
  }
  func.func @transform_3(%arg0: i32) -> (i32, i32) {
    %c0_i32 = arith.constant 0 : i32
    %c0_i32_0 = arith.constant 0 : i32
    %c0_i32_1 = arith.constant 0 : i32
    return %c0_i32, %c0_i32_0 : i32, i32
  }
  func.func @transform_4(%arg0: i32) -> (i32, i32) {
    %c0_i32 = arith.constant 0 : i32
    %c0_i32_0 = arith.constant 0 : i32
    %c0_i32_1 = arith.constant 0 : i32
    return %c0_i32, %c0_i32_0 : i32, i32
  }
  func.func @transform_5(%arg0: i32) -> (i32, i32) {
    %c0_i32 = arith.constant 0 : i32
    %c0_i32_0 = arith.constant 0 : i32
    %c0_i32_1 = arith.constant 0 : i32
    return %c0_i32, %c0_i32_0 : i32, i32
  }
  func.func @transform_6(%arg0: i32) -> (i32, i32) {
    %c0_i32 = arith.constant 0 : i32
    %c0_i32_0 = arith.constant 0 : i32
    return %c0_i32, %arg0 : i32, i32
  }
}

</mosaic_0001>

<llo_original>
// kernel: tpu_custom_call.1
$region0: #{tpu_custom_call.1}
  #allocation0 [shape = 'u32[]', space=smem, size = 0x4, offset = 0x4, fixed_abs, tag = 'smem constant byte address 0x4 - core index']
  #allocation1 [shape = 'u32[144,128]{1,0:T(1,128)}', space=vmem, size = 0x12000, scoped, tag = 'internal scratch']
  %s0 = inlined_call_operand.vmem [shape: f32[1,128], index: 0, kind: input, shape index: {}]
  %s1 = inlined_call_operand.vmem [shape: f32[200,1], index: 1, kind: input, shape index: {}]
  %s2 = inlined_call_operand.vmem [shape: f32[200,1], index: 2, kind: input, shape index: {}]
  %s3 = inlined_call_operand.vmem [shape: f32[100,200], index: 3, kind: input, shape index: {}]
  %s4 = inlined_call_operand.vmem [shape: f32[100,1], index: 4, kind: input, shape index: {}]
  %s5 = inlined_call_operand.vmem [shape: f32[2,100], index: 5, kind: input, shape index: {}]
  %s6 = inlined_call_operand.hbm [shape: f32[2,128], index: 6, kind: output, shape index: {}]
  %s7 = sld [smem:[#allocation0]]
  $region34: #{tpu_custom_call.1} parent=0
    _
  %s9 = ssub.s32 1, %s7
  %s10 = scalar_select 0, %s9, %s7
  $region1: #{tpu_custom_call.1} parent=0
    #allocation2 [shape = 'u8[1024]{0}', space=vmem, size = 0x400, scoped, tag = 'output window, operand 0, single buffered']
    #allocation3 [shape = 's32[1]{0}', space=sflag, size = 0x4, scoped, tag = 'scoped memory for tpu_custom_call.1']
    %11 = vsyncpa [#allocation3], 0
    // Predicated region
    $region2: #{tpu_custom_call.1} parent=1 // pred_check
      _
    $region3: #{tpu_custom_call.1} parent=1 // pred_check_branch
      %13 = sbr.rel (0) target = $region5
    $region4: #{tpu_custom_call.1} parent=1 // pred_region
      _
    $region5: #{tpu_custom_call.1} parent=1 // pred_fallthru
      _
    // Predicated region
    $region6: #{tpu_custom_call.1} parent=1 // pred_check
      _
    $region7: #{tpu_custom_call.1} parent=1 // pred_check_branch
      %15 = sbr.rel (0) target = $region9
    $region8: #{tpu_custom_call.1} parent=1 // pred_region
      _
    $region9: #{tpu_custom_call.1} parent=1 // pred_fallthru
      _
    // Predicated region
    $region10: #{tpu_custom_call.1} parent=1 // pred_check
      _
    $region11: #{tpu_custom_call.1} parent=1 // pred_check_branch
      %17 = sbr.rel (0) target = $region13
    $region12: #{tpu_custom_call.1} parent=1 // pred_region
      _
    $region13: #{tpu_custom_call.1} parent=1 // pred_fallthru
      _
    // Predicated region
    $region14: #{tpu_custom_call.1} parent=1 // pred_check
      _
    $region15: #{tpu_custom_call.1} parent=1 // pred_check_branch
      %19 = sbr.rel (0) target = $region17
    $region16: #{tpu_custom_call.1} parent=1 // pred_region
      _
    $region17: #{tpu_custom_call.1} parent=1 // pred_fallthru
      _
    // Predicated region
    $region18: #{tpu_custom_call.1} parent=1 // pred_check
      _
    $region19: #{tpu_custom_call.1} parent=1 // pred_check_branch
      %21 = sbr.rel (0) target = $region21
    $region20: #{tpu_custom_call.1} parent=1 // pred_region
      _
    $region21: #{tpu_custom_call.1} parent=1 // pred_fallthru
      _
    // Predicated region
    $region22: #{tpu_custom_call.1} parent=1 // pred_check
      _
    $region23: #{tpu_custom_call.1} parent=1 // pred_check_branch
      %23 = sbr.rel (0) target = $region25
    $region24: #{tpu_custom_call.1} parent=1 // pred_region
      _
    $region25: #{tpu_custom_call.1} parent=1 // pred_fallthru
      _
    %v24 = vld [vmem:[%s0] sm:$0x1]
    %v25 = vld [vmem:[%s1] sm:$0xff]
    %v26 = vld [vmem:[%s1 + $0x8] sm:$0xff]
    %v27 = vld [vmem:[%s1 + $0x10] sm:$0xff]
    %v28 = vld [vmem:[%s1 + $0x18] sm:$0xff]
    %v29 = vld [vmem:[%s1 + $0x20] sm:$0xff]
    %v30 = vld [vmem:[%s1 + $0x28] sm:$0xff]
    %v31 = vld [vmem:[%s1 + $0x30] sm:$0xff]
    %v32 = vld [vmem:[%s1 + $0x38] sm:$0xff]
    %v33 = vld [vmem:[%s1 + $0x40] sm:$0xff]
    %v34 = vld [vmem:[%s1 + $0x48] sm:$0xff]
    %v35 = vld [vmem:[%s1 + $0x50] sm:$0xff]
    %v36 = vld [vmem:[%s1 + $0x58] sm:$0xff]
    %v37 = vld [vmem:[%s1 + $0x60] sm:$0xff]
    %v38 = vld [vmem:[%s1 + $0x68] sm:$0xff]
    %v39 = vld [vmem:[%s1 + $0x70] sm:$0xff]
    %v40 = vld [vmem:[%s1 + $0x78] sm:$0xff]
    %v41 = vld [vmem:[%s1 + $0x80] sm:$0xff]
    %v42 = vld [vmem:[%s1 + $0x88] sm:$0xff]
    %v43 = vld [vmem:[%s1 + $0x90] sm:$0xff]
    %v44 = vld [vmem:[%s1 + $0x98] sm:$0xff]
    %v45 = vld [vmem:[%s1 + $0xa0] sm:$0xff]
    %v46 = vld [vmem:[%s1 + $0xa8] sm:$0xff]
    %v47 = vld [vmem:[%s1 + $0xb0] sm:$0xff]
    %v48 = vld [vmem:[%s1 + $0xb8] sm:$0xff]
    %v49 = vld [vmem:[%s1 + $0xc0] sm:$0xff]
    %51 = vset.pattern.permute.xlu0 0
    %52 = vperm.xlu0 %51, %v25
    %v53 = vpop.permute.xlu0 %52
    %56 = vset.pattern.permute.xlu0 0
    %57 = vperm.xlu0 %56, %v26
    %v58 = vpop.permute.xlu0 %57
    %61 = vset.pattern.permute.xlu0 0
    %62 = vperm.xlu0 %61, %v27
    %v63 = vpop.permute.xlu0 %62
    %66 = vset.pattern.permute.xlu0 0
    %67 = vperm.xlu0 %66, %v28
    %v68 = vpop.permute.xlu0 %67
    %71 = vset.pattern.permute.xlu0 0
    %72 = vperm.xlu0 %71, %v29
    %v73 = vpop.permute.xlu0 %72
    %76 = vset.pattern.permute.xlu0 0
    %77 = vperm.xlu0 %76, %v30
    %v78 = vpop.permute.xlu0 %77
    %81 = vset.pattern.permute.xlu0 0
    %82 = vperm.xlu0 %81, %v31
    %v83 = vpop.permute.xlu0 %82
    %86 = vset.pattern.permute.xlu0 0
    %87 = vperm.xlu0 %86, %v32
    %v88 = vpop.permute.xlu0 %87
    %91 = vset.pattern.permute.xlu0 0
    %92 = vperm.xlu0 %91, %v33
    %v93 = vpop.permute.xlu0 %92
    %96 = vset.pattern.permute.xlu0 0
    %97 = vperm.xlu0 %96, %v34
    %v98 = vpop.permute.xlu0 %97
    %101 = vset.pattern.permute.xlu0 0
    %102 = vperm.xlu0 %101, %v35
    %v103 = vpop.permute.xlu0 %102
    %106 = vset.pattern.permute.xlu0 0
    %107 = vperm.xlu0 %106, %v36
    %v108 = vpop.permute.xlu0 %107
    %111 = vset.pattern.permute.xlu0 0
    %112 = vperm.xlu0 %111, %v37
    %v113 = vpop.permute.xlu0 %112
    %116 = vset.pattern.permute.xlu0 0
    %117 = vperm.xlu0 %116, %v38
    %v118 = vpop.permute.xlu0 %117
    %121 = vset.pattern.permute.xlu0 0
    %122 = vperm.xlu0 %121, %v39
    %v123 = vpop.permute.xlu0 %122
    %126 = vset.pattern.permute.xlu0 0
    %127 = vperm.xlu0 %126, %v40
    %v128 = vpop.permute.xlu0 %127
    %131 = vset.pattern.permute.xlu0 0
    %132 = vperm.xlu0 %131, %v41
    %v133 = vpop.permute.xlu0 %132
    %136 = vset.pattern.permute.xlu0 0
    %137 = vperm.xlu0 %136, %v42
    %v138 = vpop.permute.xlu0 %137
    %141 = vset.pattern.permute.xlu0 0
    %142 = vperm.xlu0 %141, %v43
    %v143 = vpop.permute.xlu0 %142
    %146 = vset.pattern.permute.xlu0 0
    %147 = vperm.xlu0 %146, %v44
    %v148 = vpop.permute.xlu0 %147
    %151 = vset.pattern.permute.xlu0 0
    %152 = vperm.xlu0 %151, %v45
    %v153 = vpop.permute.xlu0 %152
    %156 = vset.pattern.permute.xlu0 0
    %157 = vperm.xlu0 %156, %v46
    %v158 = vpop.permute.xlu0 %157
    %161 = vset.pattern.permute.xlu0 0
    %162 = vperm.xlu0 %161, %v47
    %v163 = vpop.permute.xlu0 %162
    %166 = vset.pattern.permute.xlu0 0
    %167 = vperm.xlu0 %166, %v48
    %v168 = vpop.permute.xlu0 %167
    %171 = vset.pattern.permute.xlu0 0
    %172 = vperm.xlu0 %171, %v49
    %v173 = vpop.permute.xlu0 %172
    %v176 = vlaneseq
    %v177 = vshrl.u32 %v176, 7
    %v178 = vsub.s32 0, %v177
    %v179 = vrot.slane %v24, %v178
    %v181 = vmul.f32 %v53, %v179
    %v182 = vmul.f32 %v58, %v179
    %v183 = vmul.f32 %v63, %v179
    %v184 = vmul.f32 %v68, %v179
    %v185 = vmul.f32 %v73, %v179
    %v186 = vmul.f32 %v78, %v179
    %v187 = vmul.f32 %v83, %v179
    %v188 = vmul.f32 %v88, %v179
    %v189 = vmul.f32 %v93, %v179
    %v190 = vmul.f32 %v98, %v179
    %v191 = vmul.f32 %v103, %v179
    %v192 = vmul.f32 %v108, %v179
    %v193 = vmul.f32 %v113, %v179
    %v194 = vmul.f32 %v118, %v179
    %v195 = vmul.f32 %v123, %v179
    %v196 = vmul.f32 %v128, %v179
    %v197 = vmul.f32 %v133, %v179
    %v198 = vmul.f32 %v138, %v179
    %v199 = vmul.f32 %v143, %v179
    %v200 = vmul.f32 %v148, %v179
    %v201 = vmul.f32 %v153, %v179
    %v202 = vmul.f32 %v158, %v179
    %v203 = vmul.f32 %v163, %v179
    %v204 = vmul.f32 %v168, %v179
    %v205 = vmul.f32 %v173, %v179
    %v206 = vld [vmem:[%s2] sm:$0xff]
    %v207 = vld [vmem:[%s2 + $0x8] sm:$0xff]
    %v208 = vld [vmem:[%s2 + $0x10] sm:$0xff]
    %v209 = vld [vmem:[%s2 + $0x18] sm:$0xff]
    %v210 = vld [vmem:[%s2 + $0x20] sm:$0xff]
    %v211 = vld [vmem:[%s2 + $0x28] sm:$0xff]
    %v212 = vld [vmem:[%s2 + $0x30] sm:$0xff]
    %v213 = vld [vmem:[%s2 + $0x38] sm:$0xff]
    %v214 = vld [vmem:[%s2 + $0x40] sm:$0xff]
    %v215 = vld [vmem:[%s2 + $0x48] sm:$0xff]
    %v216 = vld [vmem:[%s2 + $0x50] sm:$0xff]
    %v217 = vld [vmem:[%s2 + $0x58] sm:$0xff]
    %v218 = vld [vmem:[%s2 + $0x60] sm:$0xff]
    %v219 = vld [vmem:[%s2 + $0x68] sm:$0xff]
    %v220 = vld [vmem:[%s2 + $0x70] sm:$0xff]
    %v221 = vld [vmem:[%s2 + $0x78] sm:$0xff]
    %v222 = vld [vmem:[%s2 + $0x80] sm:$0xff]
    %v223 = vld [vmem:[%s2 + $0x88] sm:$0xff]
    %v224 = vld [vmem:[%s2 + $0x90] sm:$0xff]
    %v225 = vld [vmem:[%s2 + $0x98] sm:$0xff]
    %v226 = vld [vmem:[%s2 + $0xa0] sm:$0xff]
    %v227 = vld [vmem:[%s2 + $0xa8] sm:$0xff]
    %v228 = vld [vmem:[%s2 + $0xb0] sm:$0xff]
    %v229 = vld [vmem:[%s2 + $0xb8] sm:$0xff]
    %v230 = vld [vmem:[%s2 + $0xc0] sm:$0xff]
    %232 = vset.pattern.permute.xlu0 0
    %233 = vperm.xlu0 %232, %v206
    %v234 = vpop.permute.xlu0 %233
    %237 = vset.pattern.permute.xlu0 0
    %238 = vperm.xlu0 %237, %v207
    %v239 = vpop.permute.xlu0 %238
    %242 = vset.pattern.permute.xlu0 0
    %243 = vperm.xlu0 %242, %v208
    %v244 = vpop.permute.xlu0 %243
    %247 = vset.pattern.permute.xlu0 0
    %248 = vperm.xlu0 %247, %v209
    %v249 = vpop.permute.xlu0 %248
    %252 = vset.pattern.permute.xlu0 0
    %253 = vperm.xlu0 %252, %v210
    %v254 = vpop.permute.xlu0 %253
    %257 = vset.pattern.permute.xlu0 0
    %258 = vperm.xlu0 %257, %v211
    %v259 = vpop.permute.xlu0 %258
    %262 = vset.pattern.permute.xlu0 0
    %263 = vperm.xlu0 %262, %v212
    %v264 = vpop.permute.xlu0 %263
    %267 = vset.pattern.permute.xlu0 0
    %268 = vperm.xlu0 %267, %v213
    %v269 = vpop.permute.xlu0 %268
    %272 = vset.pattern.permute.xlu0 0
    %273 = vperm.xlu0 %272, %v214
    %v274 = vpop.permute.xlu0 %273
    %277 = vset.pattern.permute.xlu0 0
    %278 = vperm.xlu0 %277, %v215
    %v279 = vpop.permute.xlu0 %278
    %282 = vset.pattern.permute.xlu0 0
    %283 = vperm.xlu0 %282, %v216
    %v284 = vpop.permute.xlu0 %283
    %287 = vset.pattern.permute.xlu0 0
    %288 = vperm.xlu0 %287, %v217
    %v289 = vpop.permute.xlu0 %288
    %292 = vset.pattern.permute.xlu0 0
    %293 = vperm.xlu0 %292, %v218
    %v294 = vpop.permute.xlu0 %293
    %297 = vset.pattern.permute.xlu0 0
    %298 = vperm.xlu0 %297, %v219
    %v299 = vpop.permute.xlu0 %298
    %302 = vset.pattern.permute.xlu0 0
    %303 = vperm.xlu0 %302, %v220
    %v304 = vpop.permute.xlu0 %303
    %307 = vset.pattern.permute.xlu0 0
    %308 = vperm.xlu0 %307, %v221
    %v309 = vpop.permute.xlu0 %308
    %312 = vset.pattern.permute.xlu0 0
    %313 = vperm.xlu0 %312, %v222
    %v314 = vpop.permute.xlu0 %313
    %317 = vset.pattern.permute.xlu0 0
    %318 = vperm.xlu0 %317, %v223
    %v319 = vpop.permute.xlu0 %318
    %322 = vset.pattern.permute.xlu0 0
    %323 = vperm.xlu0 %322, %v224
    %v324 = vpop.permute.xlu0 %323
    %327 = vset.pattern.permute.xlu0 0
    %328 = vperm.xlu0 %327, %v225
    %v329 = vpop.permute.xlu0 %328
    %332 = vset.pattern.permute.xlu0 0
    %333 = vperm.xlu0 %332, %v226
    %v334 = vpop.permute.xlu0 %333
    %337 = vset.pattern.permute.xlu0 0
    %338 = vperm.xlu0 %337, %v227
    %v339 = vpop.permute.xlu0 %338
    %342 = vset.pattern.permute.xlu0 0
    %343 = vperm.xlu0 %342, %v228
    %v344 = vpop.permute.xlu0 %343
    %347 = vset.pattern.permute.xlu0 0
    %348 = vperm.xlu0 %347, %v229
    %v349 = vpop.permute.xlu0 %348
    %352 = vset.pattern.permute.xlu0 0
    %353 = vperm.xlu0 %352, %v230
    %v354 = vpop.permute.xlu0 %353
    %v356 = vadd.f32 %v181, %v234
    %v357 = vadd.f32 %v182, %v239
    %v358 = vadd.f32 %v183, %v244
    %v359 = vadd.f32 %v184, %v249
    %v360 = vadd.f32 %v185, %v254
    %v361 = vadd.f32 %v186, %v259
    %v362 = vadd.f32 %v187, %v264
    %v363 = vadd.f32 %v188, %v269
    %v364 = vadd.f32 %v189, %v274
    %v365 = vadd.f32 %v190, %v279
    %v366 = vadd.f32 %v191, %v284
    %v367 = vadd.f32 %v192, %v289
    %v368 = vadd.f32 %v193, %v294
    %v369 = vadd.f32 %v194, %v299
    %v370 = vadd.f32 %v195, %v304
    %v371 = vadd.f32 %v196, %v309
    %v372 = vadd.f32 %v197, %v314
    %v373 = vadd.f32 %v198, %v319
    %v374 = vadd.f32 %v199, %v324
    %v375 = vadd.f32 %v200, %v329
    %v376 = vadd.f32 %v201, %v334
    %v377 = vadd.f32 %v202, %v339
    %v378 = vadd.f32 %v203, %v344
    %v379 = vadd.f32 %v204, %v349
    %v380 = vadd.f32 %v205, %v354
    %v381 = vtanh.pop %v356
    %v382 = vtanh.pop %v357
    %v383 = vtanh.pop %v358
    %v384 = vtanh.pop %v359
    %v385 = vtanh.pop %v360
    %v386 = vtanh.pop %v361
    %v387 = vtanh.pop %v362
    %v388 = vtanh.pop %v363
    %v389 = vtanh.pop %v364
    %v390 = vtanh.pop %v365
    %v391 = vtanh.pop %v366
    %v392 = vtanh.pop %v367
    %v393 = vtanh.pop %v368
    %v394 = vtanh.pop %v369
    %v395 = vtanh.pop %v370
    %v396 = vtanh.pop %v371
    %v397 = vtanh.pop %v372
    %v398 = vtanh.pop %v373
    %v399 = vtanh.pop %v374
    %v400 = vtanh.pop %v375
    %v401 = vtanh.pop %v376
    %v402 = vtanh.pop %v377
    %v403 = vtanh.pop %v378
    %v404 = vtanh.pop %v379
    %v405 = vtanh.pop %v380
    %v406 = vld [vmem:[%s3] sm:$0xff]
    %v407 = vld [vmem:[%s3 + $0x8] sm:$0xff]
    %v408 = vld [vmem:[%s3 + $0x10] sm:$0xff]
    %v409 = vld [vmem:[%s3 + $0x18] sm:$0xff]
    %v410 = vld [vmem:[%s3 + $0x20] sm:$0xff]
    %v411 = vld [vmem:[%s3 + $0x28] sm:$0xff]
    %v412 = vld [vmem:[%s3 + $0x30] sm:$0xff]
    %v413 = vld [vmem:[%s3 + $0x38] sm:$0xff]
    %v414 = vld [vmem:[%s3 + $0x40] sm:$0xff]
    %v415 = vld [vmem:[%s3 + $0x48] sm:$0xff]
    %v416 = vld [vmem:[%s3 + $0x50] sm:$0xff]
    %v417 = vld [vmem:[%s3 + $0x58] sm:$0xff]
    %v418 = vld [vmem:[%s3 + $0x60] sm:$0xff]
    %v419 = vld [vmem:[%s3 + $0x68] sm:$0xff]
    %v420 = vld [vmem:[%s3 + $0x70] sm:$0xff]
    %v421 = vld [vmem:[%s3 + $0x78] sm:$0xff]
    %v422 = vld [vmem:[%s3 + $0x80] sm:$0xff]
    %v423 = vld [vmem:[%s3 + $0x88] sm:$0xff]
    %v424 = vld [vmem:[%s3 + $0x90] sm:$0xff]
    %v425 = vld [vmem:[%s3 + $0x98] sm:$0xff]
    %v426 = vld [vmem:[%s3 + $0xa0] sm:$0xff]
    %v427 = vld [vmem:[%s3 + $0xa8] sm:$0xff]
    %v428 = vld [vmem:[%s3 + $0xb0] sm:$0xff]
    %v429 = vld [vmem:[%s3 + $0xb8] sm:$0xff]
    %v430 = vld [vmem:[%s3 + $0xc0] sm:$0xf]
    %v431 = vld [vmem:[%s3 + $0xc8] sm:$0xf]
    %v432 = vld [vmem:[%s4] sm:$0xff]
    %v433 = vld [vmem:[%s4 + $0x8] sm:$0xff]
    %v434 = vld [vmem:[%s4 + $0x10] sm:$0xff]
    %v435 = vld [vmem:[%s4 + $0x18] sm:$0xff]
    %v436 = vld [vmem:[%s4 + $0x20] sm:$0xff]
    %v437 = vld [vmem:[%s4 + $0x28] sm:$0xff]
    %v438 = vld [vmem:[%s4 + $0x30] sm:$0xff]
    %v439 = vld [vmem:[%s4 + $0x38] sm:$0xff]
    %v440 = vld [vmem:[%s4 + $0x40] sm:$0xff]
    %v441 = vld [vmem:[%s4 + $0x48] sm:$0xff]
    %v442 = vld [vmem:[%s4 + $0x50] sm:$0xff]
    %v443 = vld [vmem:[%s4 + $0x58] sm:$0xff]
    %v444 = vld [vmem:[%s4 + $0x60] sm:$0xf]
    %446 = vset.pattern.permute.xlu0 0
    %447 = vperm.xlu0 %446, %v432
    %v448 = vpop.permute.xlu0 %447
    %451 = vset.pattern.permute.xlu0 0
    %452 = vperm.xlu0 %451, %v433
    %v453 = vpop.permute.xlu0 %452
    %456 = vset.pattern.permute.xlu0 0
    %457 = vperm.xlu0 %456, %v434
    %v458 = vpop.permute.xlu0 %457
    %461 = vset.pattern.permute.xlu0 0
    %462 = vperm.xlu0 %461, %v435
    %v463 = vpop.permute.xlu0 %462
    %466 = vset.pattern.permute.xlu0 0
    %467 = vperm.xlu0 %466, %v436
    %v468 = vpop.permute.xlu0 %467
    %471 = vset.pattern.permute.xlu0 0
    %472 = vperm.xlu0 %471, %v437
    %v473 = vpop.permute.xlu0 %472
    %476 = vset.pattern.permute.xlu0 0
    %477 = vperm.xlu0 %476, %v438
    %v478 = vpop.permute.xlu0 %477
    %481 = vset.pattern.permute.xlu0 0
    %482 = vperm.xlu0 %481, %v439
    %v483 = vpop.permute.xlu0 %482
    %486 = vset.pattern.permute.xlu0 0
    %487 = vperm.xlu0 %486, %v440
    %v488 = vpop.permute.xlu0 %487
    %491 = vset.pattern.permute.xlu0 0
    %492 = vperm.xlu0 %491, %v441
    %v493 = vpop.permute.xlu0 %492
    %496 = vset.pattern.permute.xlu0 0
    %497 = vperm.xlu0 %496, %v442
    %v498 = vpop.permute.xlu0 %497
    %501 = vset.pattern.permute.xlu0 0
    %502 = vperm.xlu0 %501, %v443
    %v503 = vpop.permute.xlu0 %502
    %506 = vset.pattern.permute.xlu0 0
    %507 = vperm.xlu0 %506, %v444
    %v508 = vpop.permute.xlu0 %507
    %vm510 = vcmask 588800
    %v512 = vsel %vm510, %v407, 0
    %v515 = vsel %vm510, %v409, 0
    %v518 = vsel %vm510, %v411, 0
    %v521 = vsel %vm510, %v413, 0
    %v524 = vsel %vm510, %v415, 0
    %v527 = vsel %vm510, %v417, 0
    %v530 = vsel %vm510, %v419, 0
    %v533 = vsel %vm510, %v421, 0
    %v536 = vsel %vm510, %v423, 0
    %v539 = vsel %vm510, %v425, 0
    %v542 = vsel %vm510, %v427, 0
    %v545 = vsel %vm510, %v429, 0
    %v548 = vsel %vm510, %v431, 0
    %550 = vmatprep.subr.mxu0 0.0
    %551 = vmatpush1.msra.mxu0 %v381
    %552 = vmatprep.subr.mxu0 0.0
    %553 = vmatpush1.msra.mxu0 %v382
    %554 = vmatprep.subr.mxu0 0.0
    %555 = vmatpush1.msra.mxu0 %v383
    %556 = vmatprep.subr.mxu0 0.0
    %557 = vmatpush1.msra.mxu0 %v384
    %558 = vmatprep.subr.mxu0 0.0
    %559 = vmatpush1.msra.mxu0 %v385
    %560 = vmatprep.subr.mxu0 0.0
    %561 = vmatpush1.msra.mxu0 %v386
    %562 = vmatprep.subr.mxu0 0.0
    %563 = vmatpush1.msra.mxu0 %v387
    %564 = vmatprep.subr.mxu0 0.0
    %565 = vmatpush1.msra.mxu0 %v388
    %566 = vmatprep.subr.mxu0 0.0
    %567 = vmatpush1.msra.mxu0 %v389
    %568 = vmatprep.subr.mxu0 0.0
    %569 = vmatpush1.msra.mxu0 %v390
    %570 = vmatprep.subr.mxu0 0.0
    %571 = vmatpush1.msra.mxu0 %v391
    %572 = vmatprep.subr.mxu0 0.0
    %573 = vmatpush1.msra.mxu0 %v392
    %574 = vmatprep.subr.mxu0 0.0
    %575 = vmatpush1.msra.mxu0 %v393
    %576 = vmatprep.subr.mxu0 0.0
    %577 = vmatpush1.msra.mxu0 %v394
    %578 = vmatprep.subr.mxu0 0.0
    %579 = vmatpush1.msra.mxu0 %v395
    %580 = vmatprep.subr.mxu0 0.0
    %581 = vmatpush1.msra.mxu0 %v396
    %582 = vmatprep.subr.mxu0 0.0
    %583 = vmatpush1.msra.mxu0 %v397
    %584 = vmatprep.subr.mxu0 0.0
    %585 = vmatpush1.msra.mxu0 %v398
    %586 = vmatprep.subr.mxu0 0.0
    %587 = vmatpush1.msra.mxu0 %v399
    %588 = vmatprep.subr.mxu0 0.0
    %589 = vmatpush1.msra.mxu0 %v400
    %590 = vmatprep.subr.mxu0 0.0
    %591 = vmatpush1.msra.mxu0 %v401
    %592 = vmatprep.subr.mxu0 0.0
    %593 = vmatpush1.msra.mxu0 %v402
    %594 = vmatprep.subr.mxu0 0.0
    %595 = vmatpush1.msra.mxu0 %v403
    %596 = vmatprep.subr.mxu0 0.0
    %597 = vmatpush1.msra.mxu0 %v404
    %598 = vmatprep.subr.mxu0 0.0
    %599 = vmatpush1.msra.mxu0 %v405
    %600 = vmatprep.subr.mxu0 0.0
    %601 = vmatpush1.msra.mxu0 0.0
    %602 = vmatprep.subr.mxu0 0.0
    %603 = vmatpush1.msra.mxu0 0.0
    %604 = vmatprep.subr.mxu0 0.0
    %605 = vmatpush1.msra.mxu0 0.0
    %606 = vmatprep.subr.mxu0 0.0
    %607 = vmatpush1.msra.mxu0 0.0
    %608 = vmatprep.subr.mxu0 0.0
    %609 = vmatpush1.msra.mxu0 0.0
    %610 = vmatprep.subr.mxu0 0.0
    %611 = vmatpush1.msra.mxu0 0.0
    %612 = vmatprep.subr.mxu0 0.0
    %613 = vmatpush1.msra.mxu0 0.0
    %614 = vmatprep.mubr.f32.mxu0 %v512
    %615 = vmatmul.mubr.f32.gmra.mrb[0].mxu0 %v406
    %v616 = vpop.f32.mrb[0].mxu0
    %v617 = vadd.f32 %v448, %v616
    %v618 = vpop.f32.mrb[0].mxu0
    %619 = vmatprep.mubr.f32.mxu0 %v515
    %620 = vmatmul.mubr.f32.gmra.mrb[0].mxu0 %v408
    %v621 = vpop.f32.mrb[0].mxu0
    %v622 = vadd.f32 %v453, %v621
    %v623 = vpop.f32.mrb[0].mxu0
    %624 = vmatprep.mubr.f32.mxu0 %v518
    %625 = vmatmul.mubr.f32.gmra.mrb[0].mxu0 %v410
    %v626 = vpop.f32.mrb[0].mxu0
    %v627 = vadd.f32 %v458, %v626
    %v628 = vpop.f32.mrb[0].mxu0
    %629 = vmatprep.mubr.f32.mxu0 %v521
    %630 = vmatmul.mubr.f32.gmra.mrb[0].mxu0 %v412
    %v631 = vpop.f32.mrb[0].mxu0
    %v632 = vadd.f32 %v463, %v631
    %v633 = vpop.f32.mrb[0].mxu0
    %634 = vmatprep.mubr.f32.mxu0 %v524
    %635 = vmatmul.mubr.f32.gmra.mrb[0].mxu0 %v414
    %v636 = vpop.f32.mrb[0].mxu0
    %v637 = vadd.f32 %v468, %v636
    %v638 = vpop.f32.mrb[0].mxu0
    %639 = vmatprep.mubr.f32.mxu0 %v527
    %640 = vmatmul.mubr.f32.gmra.mrb[0].mxu0 %v416
    %v641 = vpop.f32.mrb[0].mxu0
    %v642 = vadd.f32 %v473, %v641
    %v643 = vpop.f32.mrb[0].mxu0
    %644 = vmatprep.mubr.f32.mxu0 %v530
    %645 = vmatmul.mubr.f32.gmra.mrb[0].mxu0 %v418
    %v646 = vpop.f32.mrb[0].mxu0
    %v647 = vadd.f32 %v478, %v646
    %v648 = vpop.f32.mrb[0].mxu0
    %649 = vmatprep.mubr.f32.mxu0 %v533
    %650 = vmatmul.mubr.f32.gmra.mrb[0].mxu0 %v420
    %v651 = vpop.f32.mrb[0].mxu0
    %v652 = vadd.f32 %v483, %v651
    %v653 = vpop.f32.mrb[0].mxu0
    %654 = vmatprep.mubr.f32.mxu0 %v536
    %655 = vmatmul.mubr.f32.gmra.mrb[0].mxu0 %v422
    %v656 = vpop.f32.mrb[0].mxu0
    %v657 = vadd.f32 %v488, %v656
    %v658 = vpop.f32.mrb[0].mxu0
    %659 = vmatprep.mubr.f32.mxu0 %v539
    %660 = vmatmul.mubr.f32.gmra.mrb[0].mxu0 %v424
    %v661 = vpop.f32.mrb[0].mxu0
    %v662 = vadd.f32 %v493, %v661
    %v663 = vpop.f32.mrb[0].mxu0
    %664 = vmatprep.mubr.f32.mxu0 %v542
    %665 = vmatmul.mubr.f32.gmra.mrb[0].mxu0 %v426
    %v666 = vpop.f32.mrb[0].mxu0
    %v667 = vadd.f32 %v498, %v666
    %v668 = vpop.f32.mrb[0].mxu0
    %669 = vmatprep.mubr.f32.mxu0 %v545
    %670 = vmatmul.mubr.f32.gmra.mrb[0].mxu0 %v428
    %v671 = vpop.f32.mrb[0].mxu0
    %v672 = vadd.f32 %v503, %v671
    %v673 = vpop.f32.mrb[0].mxu0
    %674 = vmatprep.mubr.f32.mxu0 %v548
    %675 = vmatmul.mubr.f32.gmra.mrb[0].mxu0 %v430
    %v676 = vpop.f32.mrb[0].mxu0
    %v677 = vadd.f32 %v508, %v676
    %v678 = vpop.f32.mrb[0].mxu0
    %679 = vdwg.mxu0
    %v680 = vtanh.pop %v617
    %v681 = vtanh.pop %v622
    %v682 = vtanh.pop %v627
    %v683 = vtanh.pop %v632
    %v684 = vtanh.pop %v637
    %v685 = vtanh.pop %v642
    %v686 = vtanh.pop %v647
    %v687 = vtanh.pop %v652
    %v688 = vtanh.pop %v657
    %v689 = vtanh.pop %v662
    %v690 = vtanh.pop %v667
    %v691 = vtanh.pop %v672
    %v692 = vtanh.pop %v677
    %v693 = vld [vmem:[%s5] sm:$0x3]
    %vm694 = vcmask 818176
    %v696 = vsel %vm694, %v693, 0
    %vm698 = vcmask 1043456
    %v700 = vsel %vm698, %v692, 0
    %702 = vmatprep.subr.mxu0 0.0
    %703 = vmatpush1.msra.mxu0 %v680
    %704 = vmatprep.subr.mxu0 0.0
    %705 = vmatpush1.msra.mxu0 %v681
    %706 = vmatprep.subr.mxu0 0.0
    %707 = vmatpush1.msra.mxu0 %v682
    %708 = vmatprep.subr.mxu0 0.0
    %709 = vmatpush1.msra.mxu0 %v683
    %710 = vmatprep.subr.mxu0 0.0
    %711 = vmatpush1.msra.mxu0 %v684
    %712 = vmatprep.subr.mxu0 0.0
    %713 = vmatpush1.msra.mxu0 %v685
    %714 = vmatprep.subr.mxu0 0.0
    %715 = vmatpush1.msra.mxu0 %v686
    %716 = vmatprep.subr.mxu0 0.0
    %717 = vmatpush1.msra.mxu0 %v687
    %718 = vmatprep.subr.mxu0 0.0
    %719 = vmatpush1.msra.mxu0 %v688
    %720 = vmatprep.subr.mxu0 0.0
    %721 = vmatpush1.msra.mxu0 %v689
    %722 = vmatprep.subr.mxu0 0.0
    %723 = vmatpush1.msra.mxu0 %v690
    %724 = vmatprep.subr.mxu0 0.0
    %725 = vmatpush1.msra.mxu0 %v691
    %726 = vmatprep.subr.mxu0 0.0
    %727 = vmatpush1.msra.mxu0 %v700
    %728 = vmatprep.subr.mxu0 0.0
    %729 = vmatpush1.msra.mxu0 0.0
    %730 = vmatprep.subr.mxu0 0.0
    %731 = vmatpush1.msra.mxu0 0.0
    %732 = vmatprep.subr.mxu0 0.0
    %733 = vmatpush1.msra.mxu0 0.0
    %734 = vmatprep.subr.mxu0 0.0
    %735 = vmatpush1.msra.mxu0 0.0
    %736 = vmatprep.subr.mxu0 0.0
    %737 = vmatpush1.msra.mxu0 0.0
    %738 = vmatprep.subr.mxu0 0.0
    %739 = vmatpush1.msra.mxu0 0.0
    %740 = vmatprep.subr.mxu0 0.0
    %741 = vmatpush1.msra.mxu0 0.0
    %742 = vmatprep.subr.mxu0 0.0
    %743 = vmatpush1.msra.mxu0 0.0
    %744 = vmatprep.subr.mxu0 0.0
    %745 = vmatpush1.msra.mxu0 0.0
    %746 = vmatprep.subr.mxu0 0.0
    %747 = vmatpush1.msra.mxu0 0.0
    %748 = vmatprep.subr.mxu0 0.0
    %749 = vmatpush1.msra.mxu0 0.0
    %750 = vmatprep.subr.mxu0 0.0
    %751 = vmatpush1.msra.mxu0 0.0
    %752 = vmatprep.subr.mxu0 0.0
    %753 = vmatpush1.msra.mxu0 0.0
    %754 = vmatprep.subr.mxu0 0.0
    %755 = vmatpush1.msra.mxu0 0.0
    %756 = vmatprep.subr.mxu0 0.0
    %757 = vmatpush1.msra.mxu0 0.0
    %758 = vmatprep.subr.mxu0 0.0
    %759 = vmatpush1.msra.mxu0 0.0
    %760 = vmatprep.subr.mxu0 0.0
    %761 = vmatpush1.msra.mxu0 0.0
    %762 = vmatprep.subr.mxu0 0.0
    %763 = vmatpush1.msra.mxu0 0.0
    %764 = vmatprep.subr.mxu0 0.0
    %765 = vmatpush1.msra.mxu0 0.0
    %766 = vmatprep.mubr.f32.mxu0 0.0
    %767 = vmatmul.mubr.f32.gmra.mrb[0].mxu0 %v696
    %v768 = vpop.f32.mrb[0].mxu0
    %v769 = vadd.f32 0.0, %v768
    %v770 = vpop.f32.mrb[0].mxu0
    %771 = vdwg.mxu0
    %772 = vst [vmem:[#allocation2] sm:$0x3] %v769
    // Predicated region
    $region26: #{tpu_custom_call.1} parent=1 // pred_check
      _
    $region27: #{tpu_custom_call.1} parent=1 // pred_check_branch
      %774 = sbr.rel (0) target = $region29
    $region28: #{tpu_custom_call.1} parent=1 // pred_region
      %s776 = ssub.s32 32, 32
      %777 = vsyncadd [#allocation3], %s776
      %s779 = sshll.u32 [#allocation2], 4
      %s780 = int_to_ptr.vmem [resolvable:$true] %s779
      %782 = dma.vmem_to_hbm [thread:$0]  %s780, 32, %s6, [#allocation3]
    $region29: #{tpu_custom_call.1} parent=1 // pred_fallthru
      _
    // Predicated region
    $region30: #{tpu_custom_call.1} parent=1 // pred_check
      _
    $region31: #{tpu_custom_call.1} parent=1 // pred_check_branch
      %784 = sbr.rel (0) target = $region33
    $region32: #{tpu_custom_call.1} parent=1 // pred_region
      %785 = dma.done [#allocation3], 32
    $region33: #{tpu_custom_call.1} parent=1 // pred_fallthru
      _
    %786 = vsyncpa [#allocation3], 1

</llo_original>
